<compile_context>
chip_gen: v6e
topology: v6e:2x2x1
jax: 0.10.0
libtpu: 0.0.40
codegen_flags: <defaults>
</compile_context>

<pallas_src>
import jax
import jax.numpy as jnp
from jax.experimental import pallas as pl
from jax.experimental.pallas import tpu as pltpu

HIDDEN = 512


def _round_up(n, m):
    return ((n + m - 1) // m) * m


def discriminator_kernel(x_ref, w1_ref, b1_ref, w2_ref, b2_ref, o_ref):
    # Layer 1: [TB, D] @ [D, 512] on the MXU (bf16 inputs, f32 accumulation).
    h = jnp.dot(x_ref[...], w1_ref[...], preferred_element_type=jnp.float32)
    # Bias + ReLU in f32 on the VPU (b1 is [1, 512], broadcasts over the tile).
    h = jnp.maximum(h + b1_ref[...], 0.0)
    # Layer 2 (output width 1): an N=1 MXU matmul would use <1% of the array,
    # so do a VPU multiply + XLU lane reduction instead. b2 is an SMEM scalar.
    logit = jnp.sum(h * w2_ref[...], axis=-1, keepdims=True) + b2_ref[0, 0]
    o_ref[...] = jax.nn.sigmoid(logit).astype(o_ref.dtype)


def discriminator_forward(x, w1, b1, w2, b2, *, tb=None):
    """sigmoid(relu(x @ w1 + b1) @ w2 + b2) with a batch-tiled Pallas kernel.

    x: [B, D];  w1: [D, 512];  b1: [512];  w2: [512, 1] (or [512]);  b2: [1].
    Returns [B, 1] float32.
    """
    B, D = x.shape
    H = w1.shape[1]

    # ---- wrapper-side layout / dtype plumbing (no extra HBM passes) --------
    x_bf = x.astype(jnp.bfloat16)
    w1_bf = w1.astype(jnp.bfloat16)
    b1_row = jnp.asarray(b1, jnp.float32).reshape(1, H)
    w2_row = jnp.asarray(w2, jnp.float32).reshape(1, H)   # [1, 512] row for VPU reduce
    b2_s = jnp.asarray(b2, jnp.float32).reshape(1, 1)     # SMEM scalar

    # ---- VMEM-aware batch tile ---------------------------------------------
    if tb is None:
        # Budget the double-buffered bf16 x tile (2 * TB * D * 2B) at ~6 MiB so
        # it fits the smallest scoped-VMEM default (v5e 16 MiB) with room for
        # the resident [D, 512] weight; cap at 512 rows (review default).
        budget = 6 << 20
        tb = budget // (2 * D * 2)
        tb = min(512, max(128, (tb // 128) * 128))
    if B <= tb:
        tb = _round_up(B, 16)          # single tile, sublane-aligned for bf16
        b_pad = tb
    else:
        b_pad = _round_up(B, tb)

    if b_pad != B:
        x_bf = jnp.pad(x_bf, ((0, b_pad - B), (0, 0)))

    grid = (b_pad // tb,)

    out = pl.pallas_call(
        discriminator_kernel,
        out_shape=jax.ShapeDtypeStruct((b_pad, 1), jnp.float32),
        grid=grid,
        in_specs=[
            pl.BlockSpec((tb, D), lambda i: (i, 0)),            # x: streamed over B
            pl.BlockSpec((D, H), lambda i: (0, 0)),             # W1: resident in VMEM
            pl.BlockSpec((1, H), lambda i: (0, 0)),             # b1: resident in VMEM
            pl.BlockSpec((1, H), lambda i: (0, 0)),             # w2 row: resident in VMEM
            pl.BlockSpec(memory_space=pltpu.MemorySpace.SMEM),  # b2: SMEM scalar
        ],
        out_specs=pl.BlockSpec((tb, 1), lambda i: (i, 0)),
        compiler_params=pltpu.CompilerParams(
            dimension_semantics=("parallel",),   # v7x: shard batch tiles over 2 TCs
        ),
    )(x_bf, w1_bf, b1_row, w2_row, b2_s)

    return out[:B]


def init_params(key, input_size):
    """Deterministic synthetic parameters (PyTorch-like uniform fan-in init)."""
    k1, k2, k3, k4 = jax.random.split(key, 4)
    lim1 = 1.0 / jnp.sqrt(input_size)
    lim2 = 1.0 / jnp.sqrt(HIDDEN)
    w1 = jax.random.uniform(k1, (input_size, HIDDEN), jnp.float32, -lim1, lim1)
    b1 = jax.random.uniform(k2, (HIDDEN,), jnp.float32, -lim1, lim1)
    w2 = jax.random.uniform(k3, (HIDDEN, 1), jnp.float32, -lim2, lim2)
    b2 = jax.random.uniform(k4, (1,), jnp.float32, -lim2, lim2)
    return w1, b1, w2, b2


def _reference(x, w1, b1, w2, b2):
    # Same math as the kernel: bf16-rounded x/W1, f32 everywhere else.
    xb = x.astype(jnp.bfloat16).astype(jnp.float32)
    w1b = w1.astype(jnp.bfloat16).astype(jnp.float32)
    h = jnp.maximum(
        jnp.dot(xb, w1b, precision=jax.lax.Precision.HIGHEST) + b1.reshape(1, -1), 0.0)
    logit = jnp.dot(h, w2.reshape(-1, 1), precision=jax.lax.Precision.HIGHEST)
    return jax.nn.sigmoid(logit + b2.reshape(1, 1))


if __name__ == "__main__":
    key = jax.random.PRNGKey(0)
    kx, kp, kx2 = jax.random.split(key, 3)

    # Small demo shape consistent with Discriminator(input_size).
    B, input_size = 8, 32
    x = jax.random.normal(kx, (B, input_size), jnp.float32)
    w1, b1, w2, b2 = init_params(kp, input_size)

    out = jax.block_until_ready(discriminator_forward(x, w1, b1, w2, b2))
    ref = _reference(x, w1, b1, w2, b2)
    assert out.shape == (B, 1)
    assert jnp.allclose(out, ref, atol=1e-3, rtol=1e-3)

    # Exercise the multi-tile batch grid + tail-padding path.
    B2, D2 = 300, 64
    x2 = jax.random.normal(kx2, (B2, D2), jnp.float32)
    p2 = init_params(jax.random.fold_in(kp, 1), D2)
    out2 = jax.block_until_ready(discriminator_forward(x2, *p2, tb=128))
    ref2 = _reference(x2, *p2)
    assert out2.shape == (B2, 1)
    assert jnp.allclose(out2, ref2, atol=1e-3, rtol=1e-3)

    print("KERNEL_OK")
</pallas_src>

<mosaic_0001>
module attributes {stable_mosaic.version = 11 : i64} {
  func.func @discriminator_kernel(%arg0: i32, %arg1: memref<16x32xbf16, #tpu.memory_space<vmem>>, %arg2: memref<32x512xbf16, #tpu.memory_space<vmem>>, %arg3: memref<1x512xf32, #tpu.memory_space<vmem>>, %arg4: memref<1x512xf32, #tpu.memory_space<vmem>>, %arg5: memref<1x1xf32, #tpu.memory_space<smem>>, %arg6: memref<16x1xf32, #tpu.memory_space<vmem>>) attributes {dimension_semantics = [#tpu.dimension_semantics<parallel>], iteration_bounds = array<i64: 1>, scalar_prefetch = 0 : i64, scratch_operands = 0 : i64, tpu.core_type = #tpu.core_type<tc>, window_params = [{transform_indices = @transform_0, window_bounds = array<i64: 16, 32>}, {pipeline_mode = #tpu.pipeline_mode<synchronous>, transform_indices = @transform_1, window_bounds = array<i64: 32, 512>}, {pipeline_mode = #tpu.pipeline_mode<synchronous>, transform_indices = @transform_2, window_bounds = array<i64: 1, 512>}, {pipeline_mode = #tpu.pipeline_mode<synchronous>, transform_indices = @transform_3, window_bounds = array<i64: 1, 512>}, {transform_indices = @transform_4, window_bounds = array<i64: 1, 1>}, {transform_indices = @transform_5, window_bounds = array<i64: 16, 1>}]} {
    %c0 = arith.constant 0 : index
    %c0_0 = arith.constant 0 : index
    %0 = vector.load %arg1[%c0, %c0_0] : memref<16x32xbf16, #tpu.memory_space<vmem>>, vector<16x32xbf16>
    %c0_1 = arith.constant 0 : index
    %c0_2 = arith.constant 0 : index
    %1 = vector.load %arg2[%c0_1, %c0_2] : memref<32x512xbf16, #tpu.memory_space<vmem>>, vector<32x512xbf16>
    %cst = arith.constant dense<0.000000e+00> : vector<16x512xf32>
    %2 = tpu.matmul %0, %1, %cst {dimension_numbers = #tpu.dot_dimension_numbers<[1], [0], [0], [1], [0, 0, 1, 1], [], []>} : vector<16x32xbf16>, vector<32x512xbf16>, vector<16x512xf32> -> vector<16x512xf32>
    %c0_3 = arith.constant 0 : index
    %c0_4 = arith.constant 0 : index
    %3 = vector.load %arg3[%c0_3, %c0_4] : memref<1x512xf32, #tpu.memory_space<vmem>>, vector<1x512xf32>
    %4 = vector.broadcast %3 : vector<1x512xf32> to vector<16x512xf32>
    %5 = arith.addf %2, %4 : vector<16x512xf32>
    %cst_5 = arith.constant 0.000000e+00 : f32
    %6 = vector.broadcast %cst_5 : f32 to vector<16x512xf32>
    %7 = arith.maximumf %5, %6 : vector<16x512xf32>
    %c0_6 = arith.constant 0 : index
    %c0_7 = arith.constant 0 : index
    %8 = vector.load %arg4[%c0_6, %c0_7] : memref<1x512xf32, #tpu.memory_space<vmem>>, vector<1x512xf32>
    %9 = vector.broadcast %8 : vector<1x512xf32> to vector<16x512xf32>
    %10 = arith.mulf %7, %9 : vector<16x512xf32>
    %cst_8 = arith.constant dense<0.000000e+00> : vector<16xf32>
    %11 = vector.multi_reduction <add>, %10, %cst_8 [1] : vector<16x512xf32> to vector<16xf32>
    %12 = vector.shape_cast %11 : vector<16xf32> to vector<16x1xf32>
    %c0_9 = arith.constant 0 : index
    %c0_10 = arith.constant 0 : index
    %13 = memref.load %arg5[%c0_9, %c0_10] : memref<1x1xf32, #tpu.memory_space<smem>>
    %14 = vector.broadcast %13 : f32 to vector<16x1xf32>
    %15 = arith.addf %12, %14 : vector<16x1xf32>
    %16 = arith.negf %15 : vector<16x1xf32>
    %17 = math.exp %16 : vector<16x1xf32>
    %cst_11 = arith.constant 1.000000e+00 : f32
    %18 = vector.broadcast %cst_11 : f32 to vector<16x1xf32>
    %19 = arith.addf %18, %17 : vector<16x1xf32>
    %20 = arith.divf %18, %19 : vector<16x1xf32>
    %c0_12 = arith.constant 0 : index
    %c0_13 = arith.constant 0 : index
    %21 = vector.load %arg6[%c0_12, %c0_13] : memref<16x1xf32, #tpu.memory_space<vmem>>, vector<16x1xf32>
    tpu.vector_store %arg6[%c0_12, %c0_13], %20 {strides = array<i32>} : memref<16x1xf32, #tpu.memory_space<vmem>>, vector<16x1xf32>,
    return
  }
  func.func @transform_0(%arg0: i32) -> (i32, i32) {
    %c0_i32 = arith.constant 0 : i32
    %c0_i32_0 = arith.constant 0 : i32
    return %arg0, %c0_i32 : i32, i32
  }
  func.func @transform_1(%arg0: i32) -> (i32, i32) {
    %c0_i32 = arith.constant 0 : i32
    %c0_i32_0 = arith.constant 0 : i32
    %c0_i32_1 = arith.constant 0 : i32
    return %c0_i32, %c0_i32_0 : i32, i32
  }
  func.func @transform_2(%arg0: i32) -> (i32, i32) {
    %c0_i32 = arith.constant 0 : i32
    %c0_i32_0 = arith.constant 0 : i32
    %c0_i32_1 = arith.constant 0 : i32
    return %c0_i32, %c0_i32_0 : i32, i32
  }
  func.func @transform_3(%arg0: i32) -> (i32, i32) {
    %c0_i32 = arith.constant 0 : i32
    %c0_i32_0 = arith.constant 0 : i32
    %c0_i32_1 = arith.constant 0 : i32
    return %c0_i32, %c0_i32_0 : i32, i32
  }
  func.func @transform_4(%arg0: i32) -> (i32, i32) {
    %c0_i32 = arith.constant 0 : i32
    %c0_i32_0 = arith.constant 0 : i32
    %c0_i32_1 = arith.constant 0 : i32
    return %c0_i32, %c0_i32_0 : i32, i32
  }
  func.func @transform_5(%arg0: i32) -> (i32, i32) {
    %c0_i32 = arith.constant 0 : i32
    %c0_i32_0 = arith.constant 0 : i32
    return %arg0, %c0_i32 : i32, i32
  }
}

</mosaic_0001>

<llo_original>
// kernel: tpu_custom_call.1
$region0: #{tpu_custom_call.1}
  #allocation0 [shape = 'u32[]', space=smem, size = 0x4, offset = 0x4, fixed_abs, tag = 'smem constant byte address 0x4 - core index']
  #allocation1 [shape = 'u32[144,128]{1,0:T(1,128)}', space=vmem, size = 0x12000, scoped, tag = 'internal scratch']
  #allocation2 [shape = 'f32[1,1]{1,0:T(1,128)S(6)}', space=smem, size = 0x200, scoped, tag = 'scoped memory for tpu_custom_call.1']
  %s0 = inlined_call_operand.hbm [shape: bf16[16,32], index: 0, kind: input, shape index: {}]
  %s1 = inlined_call_operand.hbm [shape: bf16[32,512], index: 1, kind: input, shape index: {}]
  %s2 = inlined_call_operand.vmem [shape: f32[1,512], index: 2, kind: input, shape index: {}]
  %s3 = inlined_call_operand.hbm [shape: f32[1,512], index: 3, kind: input, shape index: {}]
  %s4 = inlined_call_operand.<no memory space> [shape: f32[1,1], index: 4, kind: input, shape index: {}]
  %s5 = inlined_call_operand.vmem [shape: f32[16,1], index: 5, kind: output, shape index: {}]
  %s6 = sld [smem:[#allocation0]]
  $region42: #{tpu_custom_call.1} parent=0
    _
  %s8 = ssub.s32 1, %s6
  %s9 = scalar_select 0, %s8, %s6
  %10 = sst [smem:[#allocation2]] %s4
  $region1: #{tpu_custom_call.1} parent=0
    #allocation3 [shape = 'u8[4096]{0}', space=vmem, size = 0x1000, scoped, tag = 'input window, operand 0, single buffered']
    #allocation4 [shape = 's32[1]{0}', space=sflag, size = 0x4, scoped, tag = 'scoped memory for tpu_custom_call.1']
    #allocation5 [shape = 'u8[32768]{0}', space=vmem, size = 0x8000, scoped, tag = 'input window, operand 1, single buffered']
    #allocation6 [shape = 's32[1]{0}', space=sflag, size = 0x4, scoped, tag = 'scoped memory for tpu_custom_call.1']
    #allocation7 [shape = 'u8[2048]{0}', space=vmem, size = 0x800, scoped, tag = 'input window, operand 3, single buffered']
    %11 = vsyncpa [#allocation4], 0
    %12 = vsyncpa [#allocation6], 0
    // Predicated region
    $region2: #{tpu_custom_call.1} parent=1 // pred_check
      _
    $region3: #{tpu_custom_call.1} parent=1 // pred_check_branch
      %14 = sbr.rel (0) target = $region5
    $region4: #{tpu_custom_call.1} parent=1 // pred_region
      %s16 = ssub.s32 128, 128
      %17 = vsyncadd [#allocation4], %s16
      %s18 = sshll.u32 [#allocation3], 4
      %s19 = int_to_ptr.vmem [resolvable:$true] %s18
      %24 = dma.hbm_to_vmem [thread:$0]  %s0, 128, %s19, [#allocation4], 64, 64, 4
    $region5: #{tpu_custom_call.1} parent=1 // pred_fallthru
      _
    // Predicated region
    $region6: #{tpu_custom_call.1} parent=1 // pred_check
      _
    $region7: #{tpu_custom_call.1} parent=1 // pred_check_branch
      %26 = sbr.rel (0) target = $region9
    $region8: #{tpu_custom_call.1} parent=1 // pred_region
      %s28 = ssub.s32 1024, 1024
      %29 = vsyncadd [#allocation6], %s28
      %s30 = sshll.u32 [#allocation5], 4
      %s31 = int_to_ptr.vmem [resolvable:$true] %s30
      %36 = dma.hbm_to_vmem [thread:$0]  %s1, 1024, %s31, [#allocation6], 256, 256, 16
    $region9: #{tpu_custom_call.1} parent=1 // pred_fallthru
      _
    // Predicated region
    $region10: #{tpu_custom_call.1} parent=1 // pred_check
      _
    $region11: #{tpu_custom_call.1} parent=1 // pred_check_branch
      %38 = sbr.rel (0) target = $region13
    $region12: #{tpu_custom_call.1} parent=1 // pred_region
      _
    $region13: #{tpu_custom_call.1} parent=1 // pred_fallthru
      _
    // Predicated region
    $region14: #{tpu_custom_call.1} parent=1 // pred_check
      _
    $region15: #{tpu_custom_call.1} parent=1 // pred_check_branch
      %40 = sbr.rel (0) target = $region17
    $region16: #{tpu_custom_call.1} parent=1 // pred_region
      %s42 = ssub.s32 64, 64
      %43 = vsyncadd [#allocation6], %s42
      %s45 = sshll.u32 [#allocation7], 4
      %s46 = int_to_ptr.vmem [resolvable:$true] %s45
      %48 = dma.hbm_to_vmem [thread:$0]  %s3, 64, %s46, [#allocation6]
    $region17: #{tpu_custom_call.1} parent=1 // pred_fallthru
      _
    // Predicated region
    $region18: #{tpu_custom_call.1} parent=1 // pred_check
      _
    $region19: #{tpu_custom_call.1} parent=1 // pred_check_branch
      %50 = sbr.rel (0) target = $region21
    $region20: #{tpu_custom_call.1} parent=1 // pred_region
      _
    $region21: #{tpu_custom_call.1} parent=1 // pred_fallthru
      _
    // Predicated region
    $region22: #{tpu_custom_call.1} parent=1 // pred_check
      _
    $region23: #{tpu_custom_call.1} parent=1 // pred_check_branch
      %52 = sbr.rel (0) target = $region25
    $region24: #{tpu_custom_call.1} parent=1 // pred_region
      %53 = dma.done [#allocation4], 128
    $region25: #{tpu_custom_call.1} parent=1 // pred_fallthru
      _
    // Predicated region
    $region26: #{tpu_custom_call.1} parent=1 // pred_check
      _
    $region27: #{tpu_custom_call.1} parent=1 // pred_check_branch
      %55 = sbr.rel (0) target = $region29
    $region28: #{tpu_custom_call.1} parent=1 // pred_region
      %56 = dma.done [#allocation6], 1024
    $region29: #{tpu_custom_call.1} parent=1 // pred_fallthru
      _
    // Predicated region
    $region30: #{tpu_custom_call.1} parent=1 // pred_check
      _
    $region31: #{tpu_custom_call.1} parent=1 // pred_check_branch
      %58 = sbr.rel (0) target = $region33
    $region32: #{tpu_custom_call.1} parent=1 // pred_region
      %59 = dma.done [#allocation6], 64
    $region33: #{tpu_custom_call.1} parent=1 // pred_fallthru
      _
    %v61 = vld [vmem:[#allocation3] sm:$0xf]
    %v62 = vld [vmem:[#allocation3 + $0x4] sm:$0xf]
    %v63 = vld [vmem:[#allocation5] sm:$0xff]
    %v64 = vld [vmem:[#allocation5 + $0x8] sm:$0xff]
    %v65 = vld [vmem:[#allocation5 + $0x10] sm:$0xff]
    %v66 = vld [vmem:[#allocation5 + $0x18] sm:$0xff]
    %v67 = vld [vmem:[#allocation5 + $0x20] sm:$0xff]
    %v68 = vld [vmem:[#allocation5 + $0x28] sm:$0xff]
    %v69 = vld [vmem:[#allocation5 + $0x30] sm:$0xff]
    %v70 = vld [vmem:[#allocation5 + $0x38] sm:$0xff]
    %v71 = vld [vmem:[%s2] sm:$0xf]
    %v73 = vlaneseq
    %v74 = vshrl.u32 %v73, 7
    %v75 = vsub.s32 0, %v74
    %v76 = vrot.slane %v71, %v75
    %v77 = vlaneseq
    %v78 = vshrl.u32 %v77, 7
    %v79 = vsub.s32 1, %v78
    %v80 = vrot.slane %v71, %v79
    %v81 = vlaneseq
    %v82 = vshrl.u32 %v81, 7
    %v83 = vsub.s32 2, %v82
    %v84 = vrot.slane %v71, %v83
    %v85 = vlaneseq
    %v86 = vshrl.u32 %v85, 7
    %v87 = vsub.s32 3, %v86
    %v88 = vrot.slane %v71, %v87
    %v95 = vunpack.c.l.b16 %v61
    %v96 = vunpack.c.l.b16 %v62
    %v97 = vpack.c.b16 %v96, %v95
    %v106 = vunpack.c.l.b16 %v63
    %v107 = vunpack.c.h.b16 %v63
    %v108 = vunpack.c.l.b16 %v64
    %v109 = vunpack.c.h.b16 %v64
    %v110 = vunpack.c.l.b16 %v65
    %v111 = vunpack.c.h.b16 %v65
    %v112 = vunpack.c.l.b16 %v66
    %v113 = vunpack.c.h.b16 %v66
    %v114 = vunpack.c.l.b16 %v67
    %v115 = vunpack.c.h.b16 %v67
    %v116 = vunpack.c.l.b16 %v68
    %v117 = vunpack.c.h.b16 %v68
    %v118 = vunpack.c.l.b16 %v69
    %v119 = vunpack.c.h.b16 %v69
    %v120 = vunpack.c.l.b16 %v70
    %v121 = vunpack.c.h.b16 %v70
    %v122 = vpack.c.b16 %v110, %v106
    %v123 = vpack.c.b16 %v111, %v107
    %v124 = vpack.c.b16 %v112, %v108
    %v125 = vpack.c.b16 %v113, %v109
    %v126 = vpack.c.b16 %v118, %v114
    %v127 = vpack.c.b16 %v119, %v115
    %v128 = vpack.c.b16 %v120, %v116
    %v129 = vpack.c.b16 %v121, %v117
    %vm138 = vcmask 261120
    %v140 = vsel %vm138, %v97, 0
    %142 = vmatprep.subr.bf16.mxu0 0
    %143 = vmatpush1.bf16.msra.mxu0 0
    %144 = vmatprep.subr.bf16.mxu0 0
    %145 = vmatpush1.bf16.msra.mxu0 0
    %146 = vmatprep.subr.bf16.mxu0 0
    %147 = vmatpush1.bf16.msra.mxu0 0
    %148 = vmatprep.subr.bf16.mxu0 0
    %149 = vmatpush1.bf16.msra.mxu0 0
    %150 = vmatprep.subr.bf16.mxu0 0
    %151 = vmatpush1.bf16.msra.mxu0 0
    %152 = vmatprep.subr.bf16.mxu0 0
    %153 = vmatpush1.bf16.msra.mxu0 0
    %154 = vmatprep.subr.bf16.mxu0 %v127
    %155 = vmatpush1.bf16.msra.mxu0 %v126
    %156 = vmatprep.subr.bf16.mxu0 %v123
    %157 = vmatpush1.bf16.msra.mxu0 %v122
    %158 = vmatprep.subr.bf16.mxu0 0
    %159 = vmatpush2.bf16.msra.mxu0 0
    %160 = vmatprep.subr.bf16.mxu0 0
    %161 = vmatpush2.bf16.msra.mxu0 0
    %162 = vmatprep.subr.bf16.mxu0 0
    %163 = vmatpush2.bf16.msra.mxu0 0
    %164 = vmatprep.subr.bf16.mxu0 0
    %165 = vmatpush2.bf16.msra.mxu0 0
    %166 = vmatprep.subr.bf16.mxu0 0
    %167 = vmatpush2.bf16.msra.mxu0 0
    %168 = vmatprep.subr.bf16.mxu0 0
    %169 = vmatpush2.bf16.msra.mxu0 0
    %170 = vmatprep.subr.bf16.mxu0 0
    %171 = vmatpush2.bf16.msra.mxu0 0
    %172 = vmatprep.subr.bf16.mxu0 0
    %173 = vmatpush2.bf16.msra.mxu0 0
    %174 = vmatprep.mubr.bf16.mxu0 0
    %175 = vmatmul.mubr.bf16.gmra.mxu0 %v140
    %v176 = vpop.f32.mrf.mxu0
    %v177 = vadd.f32 %v76, %v176
    %v178 = vpop.f32.mrf.mxu0
    %v179 = vadd.f32 %v80, %v178
    %v180 = vpop.f32.mrf.mxu0
    %v181 = vadd.f32 %v76, %v180
    %v182 = vpop.f32.mrf.mxu0
    %v183 = vadd.f32 %v80, %v182
    %184 = vdwg.mxu0
    %185 = vmatprep.subr.bf16.mxu0 0
    %186 = vmatpush1.bf16.msra.mxu0 0
    %187 = vmatprep.subr.bf16.mxu0 0
    %188 = vmatpush1.bf16.msra.mxu0 0
    %189 = vmatprep.subr.bf16.mxu0 0
    %190 = vmatpush1.bf16.msra.mxu0 0
    %191 = vmatprep.subr.bf16.mxu0 0
    %192 = vmatpush1.bf16.msra.mxu0 0
    %193 = vmatprep.subr.bf16.mxu0 0
    %194 = vmatpush1.bf16.msra.mxu0 0
    %195 = vmatprep.subr.bf16.mxu0 0
    %196 = vmatpush1.bf16.msra.mxu0 0
    %197 = vmatprep.subr.bf16.mxu0 %v129
    %198 = vmatpush1.bf16.msra.mxu0 %v128
    %199 = vmatprep.subr.bf16.mxu0 %v125
    %200 = vmatpush1.bf16.msra.mxu0 %v124
    %201 = vmatprep.subr.bf16.mxu0 0
    %202 = vmatpush2.bf16.msra.mxu0 0
    %203 = vmatprep.subr.bf16.mxu0 0
    %204 = vmatpush2.bf16.msra.mxu0 0
    %205 = vmatprep.subr.bf16.mxu0 0
    %206 = vmatpush2.bf16.msra.mxu0 0
    %207 = vmatprep.subr.bf16.mxu0 0
    %208 = vmatpush2.bf16.msra.mxu0 0
    %209 = vmatprep.subr.bf16.mxu0 0
    %210 = vmatpush2.bf16.msra.mxu0 0
    %211 = vmatprep.subr.bf16.mxu0 0
    %212 = vmatpush2.bf16.msra.mxu0 0
    %213 = vmatprep.subr.bf16.mxu0 0
    %214 = vmatpush2.bf16.msra.mxu0 0
    %215 = vmatprep.subr.bf16.mxu0 0
    %216 = vmatpush2.bf16.msra.mxu0 0
    %217 = vmatprep.mubr.bf16.mxu0 0
    %218 = vmatmul.mubr.bf16.gmra.mxu0 %v140
    %v219 = vpop.f32.mrf.mxu0
    %v220 = vadd.f32 %v84, %v219
    %v221 = vpop.f32.mrf.mxu0
    %v222 = vadd.f32 %v88, %v221
    %v223 = vpop.f32.mrf.mxu0
    %v224 = vadd.f32 %v84, %v223
    %v225 = vpop.f32.mrf.mxu0
    %v226 = vadd.f32 %v88, %v225
    %227 = vdwg.mxu0
    %v228 = vmax.f32 %v177, 0.0
    %v229 = vmax.f32 %v179, 0.0
    %v230 = vmax.f32 %v220, 0.0
    %v231 = vmax.f32 %v222, 0.0
    %v232 = vmax.f32 %v181, 0.0
    %v233 = vmax.f32 %v183, 0.0
    %v234 = vmax.f32 %v224, 0.0
    %v235 = vmax.f32 %v226, 0.0
    %v236 = vld [vmem:[#allocation7] sm:$0xf]
    %v238 = vlaneseq
    %v239 = vshrl.u32 %v238, 7
    %v240 = vsub.s32 0, %v239
    %v241 = vrot.slane %v236, %v240
    %v242 = vlaneseq
    %v243 = vshrl.u32 %v242, 7
    %v244 = vsub.s32 1, %v243
    %v245 = vrot.slane %v236, %v244
    %v246 = vlaneseq
    %v247 = vshrl.u32 %v246, 7
    %v248 = vsub.s32 2, %v247
    %v249 = vrot.slane %v236, %v248
    %v250 = vlaneseq
    %v251 = vshrl.u32 %v250, 7
    %v252 = vsub.s32 3, %v251
    %v253 = vrot.slane %v236, %v252
    %v258 = vmul.f32 %v228, %v241
    %v259 = vmul.f32 %v229, %v245
    %v260 = vmul.f32 %v230, %v249
    %v261 = vmul.f32 %v231, %v253
    %v262 = vmul.f32 %v232, %v241
    %v263 = vmul.f32 %v233, %v245
    %v264 = vmul.f32 %v234, %v249
    %v265 = vmul.f32 %v235, %v253
    %v266 = vadd.f32 %v258, %v259
    %v267 = vadd.f32 %v266, %v260
    %v268 = vadd.f32 %v267, %v261
    %269 = vadd.xlane.f32.xlu0 %v268
    %v270 = vpop.xlane.xlu0 %269
    %v271 = vadd.f32 %v262, %v263
    %v272 = vadd.f32 %v271, %v264
    %v273 = vadd.f32 %v272, %v265
    %274 = vadd.xlane.f32.xlu0 %v273
    %v275 = vpop.xlane.xlu0 %274
    %s276 = sld [smem:[#allocation2]]
    %v277 = vstv %s276
    %v278 = vadd.f32 %v270, %v277
    %v279 = vadd.f32 %v275, %v277
    %v280 = vxor.u32 %v278, 2147483648
    %v281 = vxor.u32 %v279, 2147483648
    %v282 = vmul.f32 %v280, 1.442695
    %v283 = vpow.pop %v282
    %v284 = vmul.f32 %v281, 1.442695
    %v285 = vpow.pop %v284
    %v286 = vadd.f32 %v283, 1.0
    %v287 = vadd.f32 %v285, 1.0
    %v288 = vrcp.pop %v286
    %v289 = vmul.f32 1.0, %v288
    %v290 = vrcp.pop %v287
    %v291 = vmul.f32 1.0, %v290
    %vm292 = vcmask 7168
    %293 = vst.msk [vmem:[%s5] sm:$0xff] %vm292, %v289
    %294 = vst.msk [vmem:[%s5 + $0x8] sm:$0xff] %vm292, %v291
    // Predicated region
    $region34: #{tpu_custom_call.1} parent=1 // pred_check
      _
    $region35: #{tpu_custom_call.1} parent=1 // pred_check_branch
      %296 = sbr.rel (0) target = $region37
    $region36: #{tpu_custom_call.1} parent=1 // pred_region
      _
    $region37: #{tpu_custom_call.1} parent=1 // pred_fallthru
      _
    // Predicated region
    $region38: #{tpu_custom_call.1} parent=1 // pred_check
      _
    $region39: #{tpu_custom_call.1} parent=1 // pred_check_branch
      %298 = sbr.rel (0) target = $region41
    $region40: #{tpu_custom_call.1} parent=1 // pred_region
      _
    $region41: #{tpu_custom_call.1} parent=1 // pred_fallthru
      _
    %299 = vsyncpa [#allocation4], 1
    %300 = vsyncpa [#allocation6], 1

</llo_original>
